<compile_context>
chip_gen: v7x
topology: tpu7x:2x2x1
jax: 0.10.0
libtpu: 0.0.40
codegen_flags: <defaults>
</compile_context>

<pallas_src>
import functools

import jax
import jax.numpy as jnp
from jax import lax
from jax.experimental import pallas as pl
from jax.experimental.pallas import tpu as pltpu


def _round_up(x, m):
    return (x + m - 1) // m * m


# -----------------------------------------------------------------------------
# Pass 1: input projection, fully parallel over (time, batch) rows.
#   x_proj = embed @ W_ih^T + (b_ih + b_hh)
# -----------------------------------------------------------------------------
def _input_proj_kernel(e_ref, wih_ref, bias_ref, xp_ref):
    xp_ref[...] = (
        jnp.dot(e_ref[...], wih_ref[...], preferred_element_type=jnp.float32)
        + bias_ref[...]
    )


# -----------------------------------------------------------------------------
# Pass 2: serial recurrence over time chunks.
#   h_t = tanh(x_proj_t + h_{t-1} @ W_hh^T),  frozen once t >= real_seq_length[b]
# -----------------------------------------------------------------------------
def _rnn_recurrence_kernel(xp_ref, len_ref, whh_ref, h_out_ref, h_scratch, *,
                           t_chunk):
    c = pl.program_id(0)

    @pl.when(c == 0)
    def _():
        # h0 = zeros(1, batch, hidden_dim) in the PyTorch module.
        h_scratch[...] = jnp.zeros_like(h_scratch)

    t0 = c * t_chunk

    def step(i, carry):
        h_prev = h_scratch[...]                                   # (B, H)
        h_new = jnp.tanh(
            xp_ref[i]                                             # (B, H) precomputed x-proj
            + jnp.dot(h_prev, whh_ref[...],
                      preferred_element_type=jnp.float32)
        )
        # pack_padded_sequence semantics: only update while t < real_seq_length[b].
        mask = (t0 + i) < len_ref[...]                            # (B, 1) bool
        h_scratch[...] = jnp.where(mask, h_new, h_prev)
        return carry

    # Short, fixed trip count -> fully unrolled so the LLO scheduler can overlap
    # the W_hh matmul (MXU), tanh (EUP) and select (VPU) across steps.
    lax.fori_loop(0, t_chunk, step, 0, unroll=True)

    @pl.when(c == pl.num_programs(0) - 1)
    def _():
        h_out_ref[...] = h_scratch[...]


def rnn_module_forward(x_tokens, real_seq_length, params, *, t_chunk=8):
    """x_tokens: (S, B) int32, real_seq_length: (B,) int32."""
    S, B = x_tokens.shape
    E = params["embedding"].shape[1]
    H = params["w_hh"].shape[0]

    # Hardware-friendly padded sizes.
    B_pad = _round_up(B, 8)          # sublane
    H_pad = _round_up(H, 128)        # lane
    S_pad = _round_up(S, t_chunk)    # whole number of time chunks
    n_chunks = S_pad // t_chunk

    # Embedding lookup (gather) stays in JAX glue; zero-pad time and batch.
    embed = params["embedding"][x_tokens].astype(jnp.float32)        # (S, B, E)
    embed = jnp.pad(embed, ((0, S_pad - S), (0, B_pad - B), (0, 0)))  # (S_pad, B_pad, E)

    # Fused bias (b_ih + b_hh), zero-padded transposed weights.  Zero padding keeps
    # the padded hidden lanes exactly 0 through the recurrence (tanh(0) == 0).
    w_ih_t = jnp.zeros((E, H_pad), jnp.float32).at[:, :H].set(params["w_ih"].T)
    bias = jnp.zeros((1, H_pad), jnp.float32).at[:, :H].set(
        (params["b_ih"] + params["b_hh"]).reshape(1, H))
    w_hh_t = jnp.zeros((H_pad, H_pad), jnp.float32).at[:H, :H].set(params["w_hh"].T)

    # Padded batch rows get length 0 -> their hidden state stays at h0 = 0.
    lens = jnp.zeros((B_pad, 1), jnp.int32).at[:B, 0].set(
        real_seq_length.astype(jnp.int32))

    # ---- Pass 1: one large parallel GEMM for the input projection ------------
    rows = t_chunk * B_pad
    e2d = embed.reshape(S_pad * B_pad, E)
    x_proj = pl.pallas_call(
        _input_proj_kernel,
        out_shape=jax.ShapeDtypeStruct((S_pad * B_pad, H_pad), jnp.float32),
        grid_spec=pltpu.PrefetchScalarGridSpec(
            num_scalar_prefetch=0,
            grid=(n_chunks,),
            in_specs=[
                pl.BlockSpec((rows, E), lambda c: (c, 0)),       # embeddings chunk
                pl.BlockSpec((E, H_pad), lambda c: (0, 0)),      # W_ih^T (resident)
                pl.BlockSpec((1, H_pad), lambda c: (0, 0)),      # fused bias (resident)
            ],
            out_specs=pl.BlockSpec((rows, H_pad), lambda c: (c, 0)),
        ),
        compiler_params=pltpu.CompilerParams(
            dimension_semantics=("parallel",)),
    )(e2d, w_ih_t, bias)
    x_proj = x_proj.reshape(S_pad, B_pad, H_pad)

    # ---- Pass 2: serial recurrence, T_CHUNK steps per grid iteration ---------
    # TODO(synk): on v7x, consider pipeline_mode=pl.Buffered(1) on the resident W_hh
    # spec and an explicit vmem_limit_bytes when H is large (64 MiB VMEM per core).
    kernel = functools.partial(_rnn_recurrence_kernel, t_chunk=t_chunk)
    h_final = pl.pallas_call(
        kernel,
        out_shape=jax.ShapeDtypeStruct((B_pad, H_pad), jnp.float32),
        grid_spec=pltpu.PrefetchScalarGridSpec(
            num_scalar_prefetch=0,
            grid=(n_chunks,),
            in_specs=[
                pl.BlockSpec((t_chunk, B_pad, H_pad), lambda c: (c, 0, 0)),  # x_proj chunk
                pl.BlockSpec((B_pad, 1), lambda c: (0, 0)),                  # lengths (resident)
                pl.BlockSpec((H_pad, H_pad), lambda c: (0, 0)),              # W_hh^T (resident)
            ],
            out_specs=pl.BlockSpec((B_pad, H_pad), lambda c: (0, 0)),        # resident output
            scratch_shapes=[pltpu.VMEM((B_pad, H_pad), jnp.float32)],        # hidden state
        ),
        compiler_params=pltpu.CompilerParams(
            dimension_semantics=("arbitrary",)),                 # strictly serial in time
    )(x_proj, lens, w_hh_t)

    # Tiny final Linear head (O=2) stays in JAX so the kernel output stays lane-dense.
    h = h_final[:B, :H]
    return h @ params["w_lin"].T + params["b_lin"]


def rnn_module_reference(x_tokens, real_seq_length, params):
    """Pure-JAX reference mirroring the PyTorch forward."""
    embed = params["embedding"][x_tokens]                         # (S, B, E)
    S, B, _ = embed.shape
    H = params["w_hh"].shape[0]
    h0 = jnp.zeros((B, H), jnp.float32)

    def step(h, inp):
        e_t, t = inp
        h_new = jnp.tanh(e_t @ params["w_ih"].T + params["b_ih"]
                         + h @ params["w_hh"].T + params["b_hh"])
        mask = (t < real_seq_length)[:, None]
        return jnp.where(mask, h_new, h), None

    h_final, _ = lax.scan(step, h0, (embed, jnp.arange(S)))
    return h_final @ params["w_lin"].T + params["b_lin"]


def init_params(key, vocab_size, embedding_size, hidden_dim, num_outputs):
    ks = jax.random.split(key, 7)
    scale = 0.1
    return {
        "embedding": scale * jax.random.normal(ks[0], (vocab_size, embedding_size), jnp.float32),
        "w_ih": scale * jax.random.normal(ks[1], (hidden_dim, embedding_size), jnp.float32),
        "w_hh": scale * jax.random.normal(ks[2], (hidden_dim, hidden_dim), jnp.float32),
        "b_ih": scale * jax.random.normal(ks[3], (hidden_dim,), jnp.float32),
        "b_hh": scale * jax.random.normal(ks[4], (hidden_dim,), jnp.float32),
        "w_lin": scale * jax.random.normal(ks[5], (num_outputs, hidden_dim), jnp.float32),
        "b_lin": scale * jax.random.normal(ks[6], (num_outputs,), jnp.float32),
    }


if __name__ == "__main__":
    vocab_size, embedding_size, hidden_dim, num_outputs = 50, 32, 32, 2
    seq_len, batch = 8, 4

    key = jax.random.PRNGKey(0)
    k_tok, k_len, k_par = jax.random.split(key, 3)

    x = jax.random.randint(k_tok, (seq_len, batch), 0, vocab_size, dtype=jnp.int32)
    real_seq_length = jax.random.randint(k_len, (batch,), 1, seq_len + 1, dtype=jnp.int32)
    params = init_params(k_par, vocab_size, embedding_size, hidden_dim, num_outputs)

    out = rnn_module_forward(x, real_seq_length, params, t_chunk=8)
    out = jax.block_until_ready(out)

    ref = rnn_module_reference(x, real_seq_length, params)
    assert out.shape == (batch, num_outputs)
    assert jnp.allclose(out, ref, atol=1e-5, rtol=1e-5), (out, ref)

    print("KERNEL_OK")
</pallas_src>

<mosaic_0001>
module attributes {stable_mosaic.version = 11 : i64} {
  func.func @_input_proj_kernel(%arg0: i32, %arg1: memref<64x32xf32, #tpu.memory_space<vmem>>, %arg2: memref<32x128xf32, #tpu.memory_space<vmem>>, %arg3: memref<1x128xf32, #tpu.memory_space<vmem>>, %arg4: memref<64x128xf32, #tpu.memory_space<vmem>>) attributes {dimension_semantics = [#tpu.dimension_semantics<parallel>], iteration_bounds = array<i64: 1>, scalar_prefetch = 0 : i64, scratch_operands = 0 : i64, tpu.core_type = #tpu.core_type<tc>, window_params = [{transform_indices = @transform_0, window_bounds = array<i64: 64, 32>}, {pipeline_mode = #tpu.pipeline_mode<synchronous>, transform_indices = @transform_1, window_bounds = array<i64: 32, 128>}, {pipeline_mode = #tpu.pipeline_mode<synchronous>, transform_indices = @transform_2, window_bounds = array<i64: 1, 128>}, {transform_indices = @transform_3, window_bounds = array<i64: 64, 128>}]} {
    %c0 = arith.constant 0 : index
    %c0_0 = arith.constant 0 : index
    %0 = vector.load %arg1[%c0, %c0_0] : memref<64x32xf32, #tpu.memory_space<vmem>>, vector<64x32xf32>
    %c0_1 = arith.constant 0 : index
    %c0_2 = arith.constant 0 : index
    %1 = vector.load %arg2[%c0_1, %c0_2] : memref<32x128xf32, #tpu.memory_space<vmem>>, vector<32x128xf32>
    %cst = arith.constant dense<0.000000e+00> : vector<64x128xf32>
    %2 = tpu.matmul %0, %1, %cst {dimension_numbers = #tpu.dot_dimension_numbers<[1], [0], [0], [1], [0, 0, 1, 1], [], []>} : vector<64x32xf32>, vector<32x128xf32>, vector<64x128xf32> -> vector<64x128xf32>
    %c0_3 = arith.constant 0 : index
    %c0_4 = arith.constant 0 : index
    %3 = vector.load %arg3[%c0_3, %c0_4] : memref<1x128xf32, #tpu.memory_space<vmem>>, vector<1x128xf32>
    %4 = vector.broadcast %3 : vector<1x128xf32> to vector<64x128xf32>
    %5 = arith.addf %2, %4 : vector<64x128xf32>
    %c0_5 = arith.constant 0 : index
    %c0_6 = arith.constant 0 : index
    %6 = vector.load %arg4[%c0_5, %c0_6] : memref<64x128xf32, #tpu.memory_space<vmem>>, vector<64x128xf32>
    tpu.vector_store %arg4[%c0_5, %c0_6], %5 {strides = array<i32>} : memref<64x128xf32, #tpu.memory_space<vmem>>, vector<64x128xf32>,
    return
  }
  func.func @transform_0(%arg0: i32) -> (i32, i32) {
    %c0_i32 = arith.constant 0 : i32
    %c0_i32_0 = arith.constant 0 : i32
    return %arg0, %c0_i32 : i32, i32
  }
  func.func @transform_1(%arg0: i32) -> (i32, i32) {
    %c0_i32 = arith.constant 0 : i32
    %c0_i32_0 = arith.constant 0 : i32
    %c0_i32_1 = arith.constant 0 : i32
    return %c0_i32, %c0_i32_0 : i32, i32
  }
  func.func @transform_2(%arg0: i32) -> (i32, i32) {
    %c0_i32 = arith.constant 0 : i32
    %c0_i32_0 = arith.constant 0 : i32
    %c0_i32_1 = arith.constant 0 : i32
    return %c0_i32, %c0_i32_0 : i32, i32
  }
  func.func @transform_3(%arg0: i32) -> (i32, i32) {
    %c0_i32 = arith.constant 0 : i32
    %c0_i32_0 = arith.constant 0 : i32
    return %arg0, %c0_i32 : i32, i32
  }
}

</mosaic_0001>

<llo_original>
// kernel: tpu_custom_call.1
$region0: #{tpu_custom_call.1}
  #allocation0 [shape = 'u32[]', space=smem, size = 0x4, offset = 0x4, fixed_abs, tag = 'smem constant byte address 0x4 - core index']
  #allocation1 [shape = 'u32[144,128]{1,0:T(1,128)}', space=vmem, size = 0x12000, scoped, tag = 'internal scratch']
  %s0 = inlined_call_operand.vmem [shape: f32[64,32], index: 0, kind: input, shape index: {}]
  %s1 = inlined_call_operand.vmem [shape: f32[32,128], index: 1, kind: input, shape index: {}]
  %s2 = inlined_call_operand.vmem [shape: f32[1,128], index: 2, kind: input, shape index: {}]
  %s3 = inlined_call_operand.hbm [shape: f32[64,128], index: 3, kind: output, shape index: {}]
  %s4 = sld [smem:[#allocation0]]
  $region22: #{tpu_custom_call.1} parent=0
    _
  %s6 = ssub.s32 1, %s4
  %s7 = scalar_select 0, %s6, %s4
  $region1: #{tpu_custom_call.1} parent=0
    #allocation2 [shape = 'u8[32768]{0}', space=vmem, size = 0x8000, scoped, tag = 'output window, operand 0, single buffered']
    #allocation3 [shape = 's32[1]{0}', space=sflag, size = 0x4, scoped, tag = 'scoped memory for tpu_custom_call.1']
    %8 = vsyncpa [#allocation3], 0
    // Predicated region
    $region2: #{tpu_custom_call.1} parent=1 // pred_check
      _
    $region3: #{tpu_custom_call.1} parent=1 // pred_check_branch
      %10 = sbr.rel (0) target = $region5
    $region4: #{tpu_custom_call.1} parent=1 // pred_region
      _
    $region5: #{tpu_custom_call.1} parent=1 // pred_fallthru
      _
    // Predicated region
    $region6: #{tpu_custom_call.1} parent=1 // pred_check
      _
    $region7: #{tpu_custom_call.1} parent=1 // pred_check_branch
      %12 = sbr.rel (0) target = $region9
    $region8: #{tpu_custom_call.1} parent=1 // pred_region
      _
    $region9: #{tpu_custom_call.1} parent=1 // pred_fallthru
      _
    // Predicated region
    $region10: #{tpu_custom_call.1} parent=1 // pred_check
      _
    $region11: #{tpu_custom_call.1} parent=1 // pred_check_branch
      %14 = sbr.rel (0) target = $region13
    $region12: #{tpu_custom_call.1} parent=1 // pred_region
      _
    $region13: #{tpu_custom_call.1} parent=1 // pred_fallthru
      _
    %v15 = vld [vmem:[%s0] sm:$0xff]
    %v16 = vld [vmem:[%s0 + $0x8] sm:$0xff]
    %v17 = vld [vmem:[%s0 + $0x10] sm:$0xff]
    %v18 = vld [vmem:[%s0 + $0x18] sm:$0xff]
    %v19 = vld [vmem:[%s0 + $0x20] sm:$0xff]
    %v20 = vld [vmem:[%s0 + $0x28] sm:$0xff]
    %v21 = vld [vmem:[%s0 + $0x30] sm:$0xff]
    %v22 = vld [vmem:[%s0 + $0x38] sm:$0xff]
    %v23 = vld [vmem:[%s1] sm:$0xff]
    %v24 = vld [vmem:[%s1 + $0x8] sm:$0xff]
    %v25 = vld [vmem:[%s1 + $0x10] sm:$0xff]
    %v26 = vld [vmem:[%s1 + $0x18] sm:$0xff]
    %v27 = vld [vmem:[%s2] sm:$0x1]
    %v29 = vlaneseq
    %v30 = vshrl.u32 %v29, 7
    %v31 = vsub.s32 0, %v30
    %v32 = vrot.slane %v27, %v31
    %vm34 = vcmask 261120
    %v36 = vsel %vm34, %v15, 0
    %v39 = vsel %vm34, %v16, 0
    %v42 = vsel %vm34, %v17, 0
    %v45 = vsel %vm34, %v18, 0
    %v48 = vsel %vm34, %v19, 0
    %v51 = vsel %vm34, %v20, 0
    %v54 = vsel %vm34, %v21, 0
    %v57 = vsel %vm34, %v22, 0
    %59 = vmatprep.subr.mxu0 0.0
    %60 = vmatpush1.msra.mxu0 %v23
    %61 = vmatprep.subr.mxu0 0.0
    %62 = vmatpush1.msra.mxu0 %v24
    %63 = vmatprep.subr.mxu0 0.0
    %64 = vmatpush1.msra.mxu0 %v25
    %65 = vmatprep.subr.mxu0 0.0
    %66 = vmatpush1.msra.mxu0 %v26
    %67 = vmatprep.subr.mxu0 0.0
    %68 = vmatpush1.msra.mxu0 0.0
    %69 = vmatprep.subr.mxu0 0.0
    %70 = vmatpush1.msra.mxu0 0.0
    %71 = vmatprep.subr.mxu0 0.0
    %72 = vmatpush1.msra.mxu0 0.0
    %73 = vmatprep.subr.mxu0 0.0
    %74 = vmatpush1.msra.mxu0 0.0
    %75 = vmatprep.subr.mxu0 0.0
    %76 = vmatpush1.msra.mxu0 0.0
    %77 = vmatprep.subr.mxu0 0.0
    %78 = vmatpush1.msra.mxu0 0.0
    %79 = vmatprep.subr.mxu0 0.0
    %80 = vmatpush1.msra.mxu0 0.0
    %81 = vmatprep.subr.mxu0 0.0
    %82 = vmatpush1.msra.mxu0 0.0
    %83 = vmatprep.subr.mxu0 0.0
    %84 = vmatpush1.msra.mxu0 0.0
    %85 = vmatprep.subr.mxu0 0.0
    %86 = vmatpush1.msra.mxu0 0.0
    %87 = vmatprep.subr.mxu0 0.0
    %88 = vmatpush1.msra.mxu0 0.0
    %89 = vmatprep.subr.mxu0 0.0
    %90 = vmatpush1.msra.mxu0 0.0
    %91 = vmatprep.subr.mxu0 0.0
    %92 = vmatpush1.msra.mxu0 0.0
    %93 = vmatprep.subr.mxu0 0.0
    %94 = vmatpush1.msra.mxu0 0.0
    %95 = vmatprep.subr.mxu0 0.0
    %96 = vmatpush1.msra.mxu0 0.0
    %97 = vmatprep.subr.mxu0 0.0
    %98 = vmatpush1.msra.mxu0 0.0
    %99 = vmatprep.subr.mxu0 0.0
    %100 = vmatpush1.msra.mxu0 0.0
    %101 = vmatprep.subr.mxu0 0.0
    %102 = vmatpush1.msra.mxu0 0.0
    %103 = vmatprep.subr.mxu0 0.0
    %104 = vmatpush1.msra.mxu0 0.0
    %105 = vmatprep.subr.mxu0 0.0
    %106 = vmatpush1.msra.mxu0 0.0
    %107 = vmatprep.subr.mxu0 0.0
    %108 = vmatpush1.msra.mxu0 0.0
    %109 = vmatprep.subr.mxu0 0.0
    %110 = vmatpush1.msra.mxu0 0.0
    %111 = vmatprep.subr.mxu0 0.0
    %112 = vmatpush1.msra.mxu0 0.0
    %113 = vmatprep.subr.mxu0 0.0
    %114 = vmatpush1.msra.mxu0 0.0
    %115 = vmatprep.subr.mxu0 0.0
    %116 = vmatpush1.msra.mxu0 0.0
    %117 = vmatprep.subr.mxu0 0.0
    %118 = vmatpush1.msra.mxu0 0.0
    %119 = vmatprep.subr.mxu0 0.0
    %120 = vmatpush1.msra.mxu0 0.0
    %121 = vmatprep.subr.mxu0 0.0
    %122 = vmatpush1.msra.mxu0 0.0
    %123 = vmatprep.mubr.f32.mxu0 0.0
    %124 = vmatmul.mubr.f32.gmra.mrb[0].mxu0 %v36
    %v125 = vpop.f32.mrb[0].mxu0
    %v126 = vadd.f32 %v32, %v125
    %v127 = vpop.f32.mrb[0].mxu0
    %128 = vmatprep.mubr.f32.mxu0 0.0
    %129 = vmatmul.mubr.f32.gmra.mrb[0].mxu0 %v39
    %v130 = vpop.f32.mrb[0].mxu0
    %v131 = vadd.f32 %v32, %v130
    %v132 = vpop.f32.mrb[0].mxu0
    %133 = vmatprep.mubr.f32.mxu0 0.0
    %134 = vmatmul.mubr.f32.gmra.mrb[0].mxu0 %v42
    %v135 = vpop.f32.mrb[0].mxu0
    %v136 = vadd.f32 %v32, %v135
    %v137 = vpop.f32.mrb[0].mxu0
    %138 = vmatprep.mubr.f32.mxu0 0.0
    %139 = vmatmul.mubr.f32.gmra.mrb[0].mxu0 %v45
    %v140 = vpop.f32.mrb[0].mxu0
    %v141 = vadd.f32 %v32, %v140
    %v142 = vpop.f32.mrb[0].mxu0
    %143 = vmatprep.mubr.f32.mxu0 0.0
    %144 = vmatmul.mubr.f32.gmra.mrb[0].mxu0 %v48
    %v145 = vpop.f32.mrb[0].mxu0
    %v146 = vadd.f32 %v32, %v145
    %v147 = vpop.f32.mrb[0].mxu0
    %148 = vmatprep.mubr.f32.mxu0 0.0
    %149 = vmatmul.mubr.f32.gmra.mrb[0].mxu0 %v51
    %v150 = vpop.f32.mrb[0].mxu0
    %v151 = vadd.f32 %v32, %v150
    %v152 = vpop.f32.mrb[0].mxu0
    %153 = vmatprep.mubr.f32.mxu0 0.0
    %154 = vmatmul.mubr.f32.gmra.mrb[0].mxu0 %v54
    %v155 = vpop.f32.mrb[0].mxu0
    %v156 = vadd.f32 %v32, %v155
    %v157 = vpop.f32.mrb[0].mxu0
    %158 = vmatprep.mubr.f32.mxu0 0.0
    %159 = vmatmul.mubr.f32.gmra.mrb[0].mxu0 %v57
    %v160 = vpop.f32.mrb[0].mxu0
    %v161 = vadd.f32 %v32, %v160
    %v162 = vpop.f32.mrb[0].mxu0
    %163 = vdwg.mxu0
    %164 = vst [vmem:[#allocation2] sm:$0xff] %v126
    %165 = vst [vmem:[#allocation2 + $0x8] sm:$0xff] %v131
    %166 = vst [vmem:[#allocation2 + $0x10] sm:$0xff] %v136
    %167 = vst [vmem:[#allocation2 + $0x18] sm:$0xff] %v141
    %168 = vst [vmem:[#allocation2 + $0x20] sm:$0xff] %v146
    %169 = vst [vmem:[#allocation2 + $0x28] sm:$0xff] %v151
    %170 = vst [vmem:[#allocation2 + $0x30] sm:$0xff] %v156
    %171 = vst [vmem:[#allocation2 + $0x38] sm:$0xff] %v161
    // Predicated region
    $region14: #{tpu_custom_call.1} parent=1 // pred_check
      _
    $region15: #{tpu_custom_call.1} parent=1 // pred_check_branch
      %173 = sbr.rel (0) target = $region17
    $region16: #{tpu_custom_call.1} parent=1 // pred_region
      %s175 = ssub.s32 1024, 1024
      %176 = vsyncadd [#allocation3], %s175
      %s177 = sshll.u32 [#allocation2], 4
      %s178 = int_to_ptr.vmem [resolvable:$true] %s177
      %183 = dma.vmem_to_hbm [thread:$0]  %s178, 1024, %s3, [#allocation3], 128, 128, 8
    $region17: #{tpu_custom_call.1} parent=1 // pred_fallthru
      _
    // Predicated region
    $region18: #{tpu_custom_call.1} parent=1 // pred_check
      _
    $region19: #{tpu_custom_call.1} parent=1 // pred_check_branch
      %185 = sbr.rel (0) target = $region21
    $region20: #{tpu_custom_call.1} parent=1 // pred_region
      %186 = dma.done [#allocation3], 1024
    $region21: #{tpu_custom_call.1} parent=1 // pred_fallthru
      _
    %187 = vsyncpa [#allocation3], 1

</llo_original>
